<compile_context>
chip_gen: v5e
topology: v5e:2x2
jax: 0.10.0
libtpu: 0.0.40
codegen_flags: <defaults>
</compile_context>

<pallas_src>
import jax
import jax.numpy as jnp
from jax.experimental import pallas as pl
from jax.experimental.pallas import tpu as pltpu

HIDDEN = 50    # fixed by the module definition
H_PAD = 128    # hidden padded to one full lane register


def _round_up(x, m):
    return (x + m - 1) // m * m


def _mlp_composition_kernel(x_ref, y_ref, w1_ref, b1_ref, w2_ref, b2_ref, o_ref):
    # linear_1 applied to cat((x, y), dim=1), split into two matmuls against
    # the stacked halves of W1 (mathematically exact rewrite of the concat).
    h = (jnp.dot(x_ref[...], w1_ref[0], preferred_element_type=jnp.float32)
         + jnp.dot(y_ref[...], w1_ref[1], preferred_element_type=jnp.float32)
         + b1_ref[...])
    h = jnp.tanh(h)                       # f32 epilogue (EUP), [TB, 128]
    # linear_2
    o_ref[...] = (jnp.dot(h, w2_ref[...], preferred_element_type=jnp.float32)
                  + b2_ref[...]).astype(o_ref.dtype)


def mlp_composition(x, y, params, *, tb=512):
    """x, y: [B, R] float32. Returns [B, R] float32."""
    B, R = x.shape
    w1, b1, w2, b2 = params
    h_pad = w1.shape[-1]

    # --- choose the batch tile --------------------------------------------
    # Multiple of 8 (sublane), <= tb, and small enough that the double-buffered
    # activation tiles (x, y, out) plus the hidden temp stay well under the
    # scoped VMEM limit on every chip generation.
    bytes_per_row = 4 * (3 * R + h_pad)                       # f32: x + y + out + h
    tb_cap = max(8, ((16 * 1024 * 1024) // (2 * bytes_per_row)) // 8 * 8)
    tile_b = max(8, min(tb, tb_cap, _round_up(B, 8)) // 8 * 8)

    b_pad = _round_up(B, tile_b)
    if b_pad != B:
        x = jnp.pad(x, ((0, b_pad - B), (0, 0)))
        y = jnp.pad(y, ((0, b_pad - B), (0, 0)))

    # Activations stream; weights/biases are resident (constant index_map).
    # TODO(synk): if x/y DMA shows up exposed in a trace, sweep
    # pipeline_mode=pl.Buffered(3) on the two activation specs.
    act_spec = pl.BlockSpec((tile_b, R), lambda i: (i, 0))
    w1_spec = pl.BlockSpec(w1.shape, lambda i: (0, 0, 0))
    b1_spec = pl.BlockSpec(b1.shape, lambda i: (0, 0))
    w2_spec = pl.BlockSpec(w2.shape, lambda i: (0, 0))
    b2_spec = pl.BlockSpec(b2.shape, lambda i: (0, 0))

    out = pl.pallas_call(
        _mlp_composition_kernel,
        out_shape=jax.ShapeDtypeStruct((b_pad, R), jnp.float32),
        grid=(b_pad // tile_b,),
        in_specs=[act_spec, act_spec, w1_spec, b1_spec, w2_spec, b2_spec],
        out_specs=pl.BlockSpec((tile_b, R), lambda i: (i, 0)),
        compiler_params=pltpu.CompilerParams(
            dimension_semantics=("parallel",)),
    )(x, y, w1, b1, w2, b2)

    return out[:B] if b_pad != B else out


def init_params(key, representation_size):
    """Deterministic init mimicking torch.nn.Linear defaults
    (uniform(-1/sqrt(fan_in), 1/sqrt(fan_in))), packed/padded for the kernel."""
    R = representation_size
    k1, k2, k3, k4 = jax.random.split(key, 4)
    bound1 = 1.0 / jnp.sqrt(2.0 * R)
    bound2 = 1.0 / jnp.sqrt(float(HIDDEN))
    # linear_1: weight [50, 2R], bias [50]; linear_2: weight [R, 50], bias [R]
    w1 = jax.random.uniform(k1, (HIDDEN, 2 * R), jnp.float32, -bound1, bound1)
    b1 = jax.random.uniform(k2, (HIDDEN,), jnp.float32, -bound1, bound1)
    w2 = jax.random.uniform(k3, (R, HIDDEN), jnp.float32, -bound2, bound2)
    b2 = jax.random.uniform(k4, (R,), jnp.float32, -bound2, bound2)

    # Pack: W1 split at the cat() boundary, transposed to [in, out], stacked
    # into a single array; hidden dim zero-padded 50 -> 128 (zero pads so the
    # extra lanes are tanh(0) = 0 and contribute nothing).
    w1x = jnp.transpose(w1[:, :R])                                     # [R, 50]
    w1y = jnp.transpose(w1[:, R:])                                     # [R, 50]
    w1_stacked = jnp.stack([w1x, w1y], axis=0)                         # [2, R, 50]
    w1_p = jnp.pad(w1_stacked, ((0, 0), (0, 0), (0, H_PAD - HIDDEN)))  # [2, R, 128]
    b1_p = jnp.pad(b1, (0, H_PAD - HIDDEN))[None, :]                   # [1, 128], pads MUST be 0
    w2_p = jnp.pad(jnp.transpose(w2), ((0, H_PAD - HIDDEN), (0, 0)))   # [128, R]
    b2_2d = b2[None, :]                                                # [1, R]
    return (w1_p, b1_p, w2_p, b2_2d)


def _reference(x, y, params):
    """Pure-JAX reference of the PyTorch forward (uses the packed params)."""
    w1, b1, w2, b2 = params
    h = jnp.tanh(x @ w1[0] + y @ w1[1] + b1)
    return h @ w2 + b2


if __name__ == "__main__":
    key = jax.random.PRNGKey(0)
    kx, ky, kp, kx2, ky2 = jax.random.split(key, 5)

    # Small shapes consistent with the module: batch=8, representation_size=16.
    B, R = 8, 16
    params = init_params(kp, R)
    x = jax.random.normal(kx, (B, R), jnp.float32)
    y = jax.random.normal(ky, (B, R), jnp.float32)

    out = jax.block_until_ready(mlp_composition(x, y, params))
    ref = _reference(x, y, params)
    assert out.shape == (B, R)
    assert jnp.allclose(out, ref, atol=1e-5, rtol=1e-5), \
        float(jnp.max(jnp.abs(out - ref)))

    # Exercise the batch grid + padding path (multi-step grid, partial last tile).
    B2 = 200
    x2 = jax.random.normal(kx2, (B2, R), jnp.float32)
    y2 = jax.random.normal(ky2, (B2, R), jnp.float32)
    out2 = jax.block_until_ready(mlp_composition(x2, y2, params, tb=64))
    ref2 = _reference(x2, y2, params)
    assert out2.shape == (B2, R)
    assert jnp.allclose(out2, ref2, atol=1e-5, rtol=1e-5), \
        float(jnp.max(jnp.abs(out2 - ref2)))

    print("KERNEL_OK")
</pallas_src>

<mosaic_0001>
module attributes {stable_mosaic.version = 11 : i64} {
  func.func @_mlp_composition_kernel(%arg0: i32, %arg1: memref<8x16xf32, #tpu.memory_space<vmem>>, %arg2: memref<8x16xf32, #tpu.memory_space<vmem>>, %arg3: memref<2x16x128xf32, #tpu.memory_space<vmem>>, %arg4: memref<1x128xf32, #tpu.memory_space<vmem>>, %arg5: memref<128x16xf32, #tpu.memory_space<vmem>>, %arg6: memref<1x16xf32, #tpu.memory_space<vmem>>, %arg7: memref<8x16xf32, #tpu.memory_space<vmem>>) attributes {dimension_semantics = [#tpu.dimension_semantics<parallel>], iteration_bounds = array<i64: 1>, scalar_prefetch = 0 : i64, scratch_operands = 0 : i64, tpu.core_type = #tpu.core_type<tc>, window_params = [{transform_indices = @transform_0, window_bounds = array<i64: 8, 16>}, {transform_indices = @transform_1, window_bounds = array<i64: 8, 16>}, {pipeline_mode = #tpu.pipeline_mode<synchronous>, transform_indices = @transform_2, window_bounds = array<i64: 2, 16, 128>}, {pipeline_mode = #tpu.pipeline_mode<synchronous>, transform_indices = @transform_3, window_bounds = array<i64: 1, 128>}, {pipeline_mode = #tpu.pipeline_mode<synchronous>, transform_indices = @transform_4, window_bounds = array<i64: 128, 16>}, {pipeline_mode = #tpu.pipeline_mode<synchronous>, transform_indices = @transform_5, window_bounds = array<i64: 1, 16>}, {transform_indices = @transform_6, window_bounds = array<i64: 8, 16>}]} {
    %c0 = arith.constant 0 : index
    %c0_0 = arith.constant 0 : index
    %0 = vector.load %arg1[%c0, %c0_0] : memref<8x16xf32, #tpu.memory_space<vmem>>, vector<8x16xf32>
    %c0_1 = arith.constant 0 : index
    %c0_2 = arith.constant 0 : index
    %c0_3 = arith.constant 0 : index
    %1 = vector.load %arg3[%c0_1, %c0_2, %c0_3] : memref<2x16x128xf32, #tpu.memory_space<vmem>>, vector<1x16x128xf32>
    %2 = vector.shape_cast %1 : vector<1x16x128xf32> to vector<16x128xf32>
    %cst = arith.constant dense<0.000000e+00> : vector<8x128xf32>
    %3 = tpu.matmul %0, %2, %cst {dimension_numbers = #tpu.dot_dimension_numbers<[1], [0], [0], [1], [0, 0, 1, 1], [], []>} : vector<8x16xf32>, vector<16x128xf32>, vector<8x128xf32> -> vector<8x128xf32>
    %c0_4 = arith.constant 0 : index
    %c0_5 = arith.constant 0 : index
    %4 = vector.load %arg2[%c0_4, %c0_5] : memref<8x16xf32, #tpu.memory_space<vmem>>, vector<8x16xf32>
    %c1 = arith.constant 1 : index
    %c0_6 = arith.constant 0 : index
    %c0_7 = arith.constant 0 : index
    %5 = vector.load %arg3[%c1, %c0_6, %c0_7] : memref<2x16x128xf32, #tpu.memory_space<vmem>>, vector<1x16x128xf32>
    %6 = vector.shape_cast %5 : vector<1x16x128xf32> to vector<16x128xf32>
    %cst_8 = arith.constant dense<0.000000e+00> : vector<8x128xf32>
    %7 = tpu.matmul %4, %6, %cst_8 {dimension_numbers = #tpu.dot_dimension_numbers<[1], [0], [0], [1], [0, 0, 1, 1], [], []>} : vector<8x16xf32>, vector<16x128xf32>, vector<8x128xf32> -> vector<8x128xf32>
    %8 = arith.addf %3, %7 : vector<8x128xf32>
    %c0_9 = arith.constant 0 : index
    %c0_10 = arith.constant 0 : index
    %9 = vector.load %arg4[%c0_9, %c0_10] : memref<1x128xf32, #tpu.memory_space<vmem>>, vector<1x128xf32>
    %10 = vector.broadcast %9 : vector<1x128xf32> to vector<8x128xf32>
    %11 = arith.addf %8, %10 : vector<8x128xf32>
    %12 = math.tanh %11 : vector<8x128xf32>
    %c0_11 = arith.constant 0 : index
    %c0_12 = arith.constant 0 : index
    %13 = vector.load %arg5[%c0_11, %c0_12] : memref<128x16xf32, #tpu.memory_space<vmem>>, vector<128x16xf32>
    %cst_13 = arith.constant dense<0.000000e+00> : vector<8x16xf32>
    %14 = tpu.matmul %12, %13, %cst_13 {dimension_numbers = #tpu.dot_dimension_numbers<[1], [0], [0], [1], [0, 0, 1, 1], [], []>} : vector<8x128xf32>, vector<128x16xf32>, vector<8x16xf32> -> vector<8x16xf32>
    %c0_14 = arith.constant 0 : index
    %c0_15 = arith.constant 0 : index
    %15 = vector.load %arg6[%c0_14, %c0_15] : memref<1x16xf32, #tpu.memory_space<vmem>>, vector<1x16xf32>
    %16 = vector.broadcast %15 : vector<1x16xf32> to vector<8x16xf32>
    %17 = arith.addf %14, %16 : vector<8x16xf32>
    %c0_16 = arith.constant 0 : index
    %c0_17 = arith.constant 0 : index
    %18 = vector.load %arg7[%c0_16, %c0_17] : memref<8x16xf32, #tpu.memory_space<vmem>>, vector<8x16xf32>
    tpu.vector_store %arg7[%c0_16, %c0_17], %17 {strides = array<i32>} : memref<8x16xf32, #tpu.memory_space<vmem>>, vector<8x16xf32>,
    return
  }
  func.func @transform_0(%arg0: i32) -> (i32, i32) {
    %c0_i32 = arith.constant 0 : i32
    %c0_i32_0 = arith.constant 0 : i32
    return %arg0, %c0_i32 : i32, i32
  }
  func.func @transform_1(%arg0: i32) -> (i32, i32) {
    %c0_i32 = arith.constant 0 : i32
    %c0_i32_0 = arith.constant 0 : i32
    return %arg0, %c0_i32 : i32, i32
  }
  func.func @transform_2(%arg0: i32) -> (i32, i32, i32) {
    %c0_i32 = arith.constant 0 : i32
    %c0_i32_0 = arith.constant 0 : i32
    %c0_i32_1 = arith.constant 0 : i32
    %c0_i32_2 = arith.constant 0 : i32
    return %c0_i32, %c0_i32_0, %c0_i32_1 : i32, i32, i32
  }
  func.func @transform_3(%arg0: i32) -> (i32, i32) {
    %c0_i32 = arith.constant 0 : i32
    %c0_i32_0 = arith.constant 0 : i32
    %c0_i32_1 = arith.constant 0 : i32
    return %c0_i32, %c0_i32_0 : i32, i32
  }
  func.func @transform_4(%arg0: i32) -> (i32, i32) {
    %c0_i32 = arith.constant 0 : i32
    %c0_i32_0 = arith.constant 0 : i32
    %c0_i32_1 = arith.constant 0 : i32
    return %c0_i32, %c0_i32_0 : i32, i32
  }
  func.func @transform_5(%arg0: i32) -> (i32, i32) {
    %c0_i32 = arith.constant 0 : i32
    %c0_i32_0 = arith.constant 0 : i32
    %c0_i32_1 = arith.constant 0 : i32
    return %c0_i32, %c0_i32_0 : i32, i32
  }
  func.func @transform_6(%arg0: i32) -> (i32, i32) {
    %c0_i32 = arith.constant 0 : i32
    %c0_i32_0 = arith.constant 0 : i32
    return %arg0, %c0_i32 : i32, i32
  }
}

</mosaic_0001>

<llo_original>
// kernel: tpu_custom_call.1
$region0: #{tpu_custom_call.1}
  #allocation0 [shape = 'u32[]', space=smem, size = 0x4, offset = 0x4, fixed_abs, tag = 'smem constant byte address 0x4 - core index']
  #allocation1 [shape = 'u32[72,128]{1,0:T(1,128)}', space=vmem, size = 0x9000, scoped, tag = 'internal scratch']
  %s0 = inlined_call_operand.vmem [shape: f32[8,16], index: 0, kind: input, shape index: {}]
  %s1 = inlined_call_operand.vmem [shape: f32[8,16], index: 1, kind: input, shape index: {}]
  %s2 = inlined_call_operand.vmem [shape: f32[2,16,128], index: 2, kind: input, shape index: {}]
  %s3 = inlined_call_operand.vmem [shape: f32[1,128], index: 3, kind: input, shape index: {}]
  %s4 = inlined_call_operand.vmem [shape: f32[128,16], index: 4, kind: input, shape index: {}]
  %s5 = inlined_call_operand.vmem [shape: f32[1,16], index: 5, kind: input, shape index: {}]
  %s6 = inlined_call_operand.hbm [shape: f32[8,16], index: 6, kind: output, shape index: {}]
  %s7 = sld [smem:[#allocation0]]
  $region34: #{tpu_custom_call.1} parent=0
    _
  %s9 = ssub.s32 1, %s7
  %s10 = scalar_select 0, %s9, %s7
  $region1: #{tpu_custom_call.1} parent=0
    #allocation2 [shape = 'u8[4096]{0}', space=vmem, size = 0x1000, scoped, tag = 'output window, operand 0, single buffered']
    #allocation3 [shape = 's32[1]{0}', space=sflag, size = 0x4, scoped, tag = 'scoped memory for tpu_custom_call.1']
    %11 = vsyncpa [#allocation3], 0
    // Predicated region
    $region2: #{tpu_custom_call.1} parent=1 // pred_check
      _
    $region3: #{tpu_custom_call.1} parent=1 // pred_check_branch
      %13 = sbr.rel (0) target = $region5
    $region4: #{tpu_custom_call.1} parent=1 // pred_region
      _
    $region5: #{tpu_custom_call.1} parent=1 // pred_fallthru
      _
    // Predicated region
    $region6: #{tpu_custom_call.1} parent=1 // pred_check
      _
    $region7: #{tpu_custom_call.1} parent=1 // pred_check_branch
      %15 = sbr.rel (0) target = $region9
    $region8: #{tpu_custom_call.1} parent=1 // pred_region
      _
    $region9: #{tpu_custom_call.1} parent=1 // pred_fallthru
      _
    // Predicated region
    $region10: #{tpu_custom_call.1} parent=1 // pred_check
      _
    $region11: #{tpu_custom_call.1} parent=1 // pred_check_branch
      %17 = sbr.rel (0) target = $region13
    $region12: #{tpu_custom_call.1} parent=1 // pred_region
      _
    $region13: #{tpu_custom_call.1} parent=1 // pred_fallthru
      _
    // Predicated region
    $region14: #{tpu_custom_call.1} parent=1 // pred_check
      _
    $region15: #{tpu_custom_call.1} parent=1 // pred_check_branch
      %19 = sbr.rel (0) target = $region17
    $region16: #{tpu_custom_call.1} parent=1 // pred_region
      _
    $region17: #{tpu_custom_call.1} parent=1 // pred_fallthru
      _
    // Predicated region
    $region18: #{tpu_custom_call.1} parent=1 // pred_check
      _
    $region19: #{tpu_custom_call.1} parent=1 // pred_check_branch
      %21 = sbr.rel (0) target = $region21
    $region20: #{tpu_custom_call.1} parent=1 // pred_region
      _
    $region21: #{tpu_custom_call.1} parent=1 // pred_fallthru
      _
    // Predicated region
    $region22: #{tpu_custom_call.1} parent=1 // pred_check
      _
    $region23: #{tpu_custom_call.1} parent=1 // pred_check_branch
      %23 = sbr.rel (0) target = $region25
    $region24: #{tpu_custom_call.1} parent=1 // pred_region
      _
    $region25: #{tpu_custom_call.1} parent=1 // pred_fallthru
      _
    %v24 = vld [vmem:[%s0] sm:$0xff]
    %v25 = vld [vmem:[%s2] sm:$0xff]
    %v26 = vld [vmem:[%s2 + $0x8] sm:$0xff]
    %v27 = vld [vmem:[%s1] sm:$0xff]
    %s28 = scalar_lea.vmem %s2, 16
    %v29 = vld [vmem:[%s28] sm:$0xff]
    %v30 = vld [vmem:[%s28 + $0x8] sm:$0xff]
    %vm31 = vcmask 130048
    %v33 = vsel %vm31, %v27, 0
    %35 = vmatpush.msra.mxu0 0.0
    %36 = vmatpush.msra.mxu0 0.0
    %37 = vmatpush.msra.mxu0 0.0
    %38 = vmatpush.msra.mxu0 0.0
    %39 = vmatpush.msra.mxu0 0.0
    %40 = vmatpush.msra.mxu0 0.0
    %41 = vmatpush.msra.mxu0 0.0
    %42 = vmatpush.msra.mxu0 0.0
    %43 = vmatpush.msra.mxu0 0.0
    %44 = vmatpush.msra.mxu0 0.0
    %45 = vmatpush.msra.mxu0 0.0
    %46 = vmatpush.msra.mxu0 0.0
    %47 = vmatpush.msra.mxu0 0.0
    %48 = vmatpush.msra.mxu0 0.0
    %49 = vmatpush.msra.mxu0 %v30
    %50 = vmatpush.msra.mxu0 %v29
    %51 = vmatmul.f32.gmra.mxu0 %v33
    %v52 = vpop.f32.mrf.mxu0
    %v53 = vadd.f32 0.0, %v52
    %54 = vdwg.mxu0
    %v56 = vsel %vm31, %v24, 0
    %58 = vmatpush.msra.mxu0 0.0
    %59 = vmatpush.msra.mxu0 0.0
    %60 = vmatpush.msra.mxu0 0.0
    %61 = vmatpush.msra.mxu0 0.0
    %62 = vmatpush.msra.mxu0 0.0
    %63 = vmatpush.msra.mxu0 0.0
    %64 = vmatpush.msra.mxu0 0.0
    %65 = vmatpush.msra.mxu0 0.0
    %66 = vmatpush.msra.mxu0 0.0
    %67 = vmatpush.msra.mxu0 0.0
    %68 = vmatpush.msra.mxu0 0.0
    %69 = vmatpush.msra.mxu0 0.0
    %70 = vmatpush.msra.mxu0 0.0
    %71 = vmatpush.msra.mxu0 0.0
    %72 = vmatpush.msra.mxu0 %v26
    %73 = vmatpush.msra.mxu0 %v25
    %74 = vmatmul.f32.gmra.mxu0 %v56
    %v75 = vpop.f32.mrf.mxu0
    %v76 = vadd.f32 %v53, %v75
    %77 = vdwg.mxu0
    %v78 = vld [vmem:[%s3] sm:$0x1]
    %v80 = vperm.slane %v78, 0
    %v82 = vadd.f32 %v76, %v80
    %v83 = vtanh.pop %v82
    %v84 = vld [vmem:[%s4] sm:$0xff]
    %v85 = vld [vmem:[%s4 + $0x8] sm:$0xff]
    %v86 = vld [vmem:[%s4 + $0x10] sm:$0xff]
    %v87 = vld [vmem:[%s4 + $0x18] sm:$0xff]
    %v88 = vld [vmem:[%s4 + $0x20] sm:$0xff]
    %v89 = vld [vmem:[%s4 + $0x28] sm:$0xff]
    %v90 = vld [vmem:[%s4 + $0x30] sm:$0xff]
    %v91 = vld [vmem:[%s4 + $0x38] sm:$0xff]
    %v92 = vld [vmem:[%s4 + $0x40] sm:$0xff]
    %v93 = vld [vmem:[%s4 + $0x48] sm:$0xff]
    %v94 = vld [vmem:[%s4 + $0x50] sm:$0xff]
    %v95 = vld [vmem:[%s4 + $0x58] sm:$0xff]
    %v96 = vld [vmem:[%s4 + $0x60] sm:$0xff]
    %v97 = vld [vmem:[%s4 + $0x68] sm:$0xff]
    %v98 = vld [vmem:[%s4 + $0x70] sm:$0xff]
    %v99 = vld [vmem:[%s4 + $0x78] sm:$0xff]
    %v100 = vld [vmem:[%s5] sm:$0x1]
    %v102 = vperm.slane %v100, 0
    %104 = vmatpush.msra.mxu0 %v99
    %105 = vmatpush.msra.mxu0 %v98
    %106 = vmatpush.msra.mxu0 %v97
    %107 = vmatpush.msra.mxu0 %v96
    %108 = vmatpush.msra.mxu0 %v95
    %109 = vmatpush.msra.mxu0 %v94
    %110 = vmatpush.msra.mxu0 %v93
    %111 = vmatpush.msra.mxu0 %v92
    %112 = vmatpush.msra.mxu0 %v91
    %113 = vmatpush.msra.mxu0 %v90
    %114 = vmatpush.msra.mxu0 %v89
    %115 = vmatpush.msra.mxu0 %v88
    %116 = vmatpush.msra.mxu0 %v87
    %117 = vmatpush.msra.mxu0 %v86
    %118 = vmatpush.msra.mxu0 %v85
    %119 = vmatpush.msra.mxu0 %v84
    %120 = vmatmul.f32.gmra.mxu0 %v83
    %v121 = vpop.f32.mrf.mxu0
    %v122 = vadd.f32 %v102, %v121
    %123 = vdwg.mxu0
    %124 = vst.msk [vmem:[#allocation2] sm:$0xff] %vm31, %v122
    // Predicated region
    $region26: #{tpu_custom_call.1} parent=1 // pred_check
      _
    $region27: #{tpu_custom_call.1} parent=1 // pred_check_branch
      %126 = sbr.rel (0) target = $region29
    $region28: #{tpu_custom_call.1} parent=1 // pred_region
      %128 = vsyncadd [#allocation3], 0
      %s130 = sshll.u32 [#allocation2], 4
      %s131 = int_to_ptr.vmem [resolvable:$true] %s130
      %s132 = sshll.u32 %s6, 4
      %s133 = int_to_ptr.hbm [resolvable:$true] %s132
      %135 = dma.vmem_to_hbm [thread:$0]  %s131, 128, %s133, [#allocation3]
    $region29: #{tpu_custom_call.1} parent=1 // pred_fallthru
      _
    // Predicated region
    $region30: #{tpu_custom_call.1} parent=1 // pred_check
      _
    $region31: #{tpu_custom_call.1} parent=1 // pred_check_branch
      %137 = sbr.rel (0) target = $region33
    $region32: #{tpu_custom_call.1} parent=1 // pred_region
      %139 = dma.done [#allocation3], 128
    $region33: #{tpu_custom_call.1} parent=1 // pred_fallthru
      _
    %140 = vsyncpa [#allocation3], 1

</llo_original>
